<compile_context>
chip_gen: v6e
topology: v6e:2x2x1
jax: 0.10.0
libtpu: 0.0.40
codegen_flags: <defaults>
</compile_context>

<pallas_src>
import functools

import jax
import jax.numpy as jnp
from jax.experimental import pallas as pl
from jax.experimental.pallas import tpu as pltpu

H1 = 64        # per-branch hidden 1
H2 = 128       # per-branch hidden 2
FH1 = 2 * H1   # fused hidden 1  (actor | critic)
FH2 = 2 * H2   # fused hidden 2


def fused_mlp_kernel(x_ref, w1_ref, b1_ref, w2_ref, b2_ref, w3_ref, b3_ref,
                     o_ref):
    # Layer 1: (TM,F)bf16 @ (F,128)bf16 -> f32, + bias, ReLU.  ReLU applies to
    # both branches (critic Dropout is identity in eval mode).
    h = jnp.dot(x_ref[...], w1_ref[...], preferred_element_type=jnp.float32)
    h = jnp.maximum(h + b1_ref[...], 0.0).astype(jnp.bfloat16)
    # Layer 2: block-diagonal (128,256).
    h = jnp.dot(h, w2_ref[...], preferred_element_type=jnp.float32)
    h = jnp.maximum(h + b2_ref[...], 0.0).astype(jnp.bfloat16)
    # Layer 3: block-diagonal, zero-padded to a lane-dense (256,OUT) matrix.
    o = jnp.dot(h, w3_ref[...], preferred_element_type=jnp.float32) + b3_ref[...]
    o_ref[...] = o.astype(o_ref.dtype)


def _round_up(n, m):
    return ((n + m - 1) // m) * m


def pack_fused_params(params, out_actions):
    """Pack the 6 per-branch Linear layers into 3 fused/block-diag bf16 ones.

    Call ONCE at init (or whenever the params change), not per forward.
    """
    A = out_actions
    OUT = max(128, _round_up(A + 1, 128))          # lane-dense output width
    w1 = jnp.concatenate([params["wa1"], params["wc1"]], axis=1)   # (F, 128)
    b1 = jnp.concatenate([params["ba1"], params["bc1"]], axis=1)   # (1, 128)
    w2 = jnp.zeros((FH1, FH2), jnp.float32)
    w2 = w2.at[:H1, :H2].set(params["wa2"]).at[H1:, H2:].set(params["wc2"])
    b2 = jnp.concatenate([params["ba2"], params["bc2"]], axis=1)   # (1, 256)
    w3 = jnp.zeros((FH2, OUT), jnp.float32)
    w3 = w3.at[:H2, :A].set(params["wa3"]).at[H2:, A:A + 1].set(params["wc3"])
    b3 = jnp.zeros((1, OUT), jnp.float32)
    b3 = b3.at[:, :A].set(params["ba3"]).at[:, A:A + 1].set(params["bc3"])
    # bf16 matmul operands; f32 biases (added after the f32 accumulation).
    return (w1.astype(jnp.bfloat16), b1.astype(jnp.float32),
            w2.astype(jnp.bfloat16), b2.astype(jnp.float32),
            w3.astype(jnp.bfloat16), b3.astype(jnp.float32))


def _choose_tm(n_rows):
    """Pick the batch tile.  `n_rows` is already a multiple of 8."""
    if n_rows <= 64:
        return n_rows                       # tiny batch: one full tile
    if n_rows >= 32768:
        tm = 2048
    elif n_rows >= 8192:
        tm = 1024
    else:
        tm = 512
    # Guarantee ~>=4 grid steps so ("parallel",) can shard rows across both
    # v7x TensorCores and the pipeline has more than one stage.
    tm = min(tm, _round_up(pl.cdiv(n_rows, 4), 8))
    return max(tm, 8)


@functools.partial(jax.jit, static_argnums=(2,))
def aac_policy_forward(x, packed_params, out_actions):
    """x: (N, F) float32.  Returns (action_scores (N,A) f32, state_values (N,1) f32)."""
    w1, b1, w2, b2, w3, b3 = packed_params
    N, F = x.shape
    OUT = w3.shape[1]

    # Sublane alignment only (<=7 extra rows); NOT padded to a multiple of TM —
    # the partial last grid block is masked by Pallas.
    N_pad = _round_up(N, 8)
    if N_pad != N:
        x = jnp.pad(x, ((0, N_pad - N), (0, 0)))
    x = x.astype(jnp.bfloat16)

    TM = _choose_tm(N_pad)
    grid = (pl.cdiv(N_pad, TM),)

    flops = 2 * N_pad * (F * FH1 + FH1 * FH2 + FH2 * OUT)
    bytes_accessed = (2 * N_pad * F                               # x (bf16)
                      + 2 * (F * FH1 + FH1 * FH2 + FH2 * OUT)     # weights (bf16)
                      + 4 * (FH1 + FH2 + OUT)                     # biases (f32)
                      + 2 * N_pad * OUT)                          # out (bf16)

    fused = pl.pallas_call(
        fused_mlp_kernel,
        grid=grid,
        in_specs=[
            pl.BlockSpec((TM, F), lambda i: (i, 0)),      # x: tiled over batch
            pl.BlockSpec((F, FH1), lambda i: (0, 0)),     # weights / biases:
            pl.BlockSpec((1, FH1), lambda i: (0, 0)),     # constant index maps
            pl.BlockSpec((FH1, FH2), lambda i: (0, 0)),   # -> VMEM-resident
            pl.BlockSpec((1, FH2), lambda i: (0, 0)),     #    across grid steps
            pl.BlockSpec((FH2, OUT), lambda i: (0, 0)),
            pl.BlockSpec((1, OUT), lambda i: (0, 0)),
        ],
        out_specs=pl.BlockSpec((TM, OUT), lambda i: (i, 0)),
        out_shape=jax.ShapeDtypeStruct((N_pad, OUT), jnp.bfloat16),
        compiler_params=pltpu.CompilerParams(
            dimension_semantics=("parallel",)),
        cost_estimate=pl.CostEstimate(
            flops=flops, transcendentals=0, bytes_accessed=bytes_accessed),
    )(x, w1, b1, w2, b2, w3, b3)

    A = out_actions
    action_scores = fused[:N, :A].astype(jnp.float32)
    state_values = fused[:N, A:A + 1].astype(jnp.float32)
    return action_scores, state_values


def init_params(key, in_features, out_actions):
    """Deterministic init mimicking nn.Linear: U(-1/sqrt(fan_in), 1/sqrt(fan_in)).
    Weights stored transposed as (in, out); biases as (1, out)."""
    def linear(k, fan_in, fan_out):
        kw, kb = jax.random.split(k)
        bound = 1.0 / jnp.sqrt(jnp.float32(fan_in))
        w = jax.random.uniform(kw, (fan_in, fan_out), jnp.float32, -bound, bound)
        b = jax.random.uniform(kb, (1, fan_out), jnp.float32, -bound, bound)
        return w, b

    ks = jax.random.split(key, 6)
    p = {}
    p["wa1"], p["ba1"] = linear(ks[0], in_features, H1)
    p["wa2"], p["ba2"] = linear(ks[1], H1, H2)
    p["wa3"], p["ba3"] = linear(ks[2], H2, out_actions)
    p["wc1"], p["bc1"] = linear(ks[3], in_features, H1)
    p["wc2"], p["bc2"] = linear(ks[4], H1, H2)
    p["wc3"], p["bc3"] = linear(ks[5], H2, 1)
    return p


def reference_forward(x, p):
    """Pure-JAX f32 reference on the original (unfused) params; eval-mode dropout."""
    h = jnp.maximum(x @ p["wa1"] + p["ba1"], 0.0)
    h = jnp.maximum(h @ p["wa2"] + p["ba2"], 0.0)
    act = h @ p["wa3"] + p["ba3"]
    g = jnp.maximum(x @ p["wc1"] + p["bc1"], 0.0)
    g = jnp.maximum(g @ p["wc2"] + p["bc2"], 0.0)
    val = g @ p["wc3"] + p["bc3"]
    return act, val


if __name__ == "__main__":
    key = jax.random.PRNGKey(0)
    k_x, k_p = jax.random.split(key)

    batch = 8
    in_features = 16
    out_actions = 6

    x = jax.random.normal(k_x, (batch, in_features), jnp.float32)
    params = init_params(k_p, in_features, out_actions)

    # Pack/fuse the weights ONCE (hoisted out of the per-forward path).
    packed = pack_fused_params(params, out_actions)
    packed = jax.block_until_ready(packed)

    action_scores, state_values = aac_policy_forward(x, packed, out_actions)
    jax.block_until_ready((action_scores, state_values))

    ref_act, ref_val = reference_forward(x, params)
    assert action_scores.shape == (batch, out_actions)
    assert state_values.shape == (batch, 1)
    # bf16 matmul operands -> relaxed tolerances vs. the f32 reference.
    assert jnp.allclose(action_scores, ref_act, atol=5e-2, rtol=5e-2)
    assert jnp.allclose(state_values, ref_val, atol=5e-2, rtol=5e-2)

    print("KERNEL_OK")
</pallas_src>

<mosaic_0001>
module attributes {stable_mosaic.version = 11 : i64} {
  func.func @fused_mlp_kernel(%arg0: i32, %arg1: memref<8x16xbf16, #tpu.memory_space<vmem>>, %arg2: memref<16x128xbf16, #tpu.memory_space<vmem>>, %arg3: memref<1x128xf32, #tpu.memory_space<vmem>>, %arg4: memref<128x256xbf16, #tpu.memory_space<vmem>>, %arg5: memref<1x256xf32, #tpu.memory_space<vmem>>, %arg6: memref<256x128xbf16, #tpu.memory_space<vmem>>, %arg7: memref<1x128xf32, #tpu.memory_space<vmem>>, %arg8: memref<8x128xbf16, #tpu.memory_space<vmem>>) attributes {dimension_semantics = [#tpu.dimension_semantics<parallel>], iteration_bounds = array<i64: 1>, scalar_prefetch = 0 : i64, scratch_operands = 0 : i64, tpu.core_type = #tpu.core_type<tc>, window_params = [{transform_indices = @transform_0, window_bounds = array<i64: 8, 16>}, {pipeline_mode = #tpu.pipeline_mode<synchronous>, transform_indices = @transform_1, window_bounds = array<i64: 16, 128>}, {pipeline_mode = #tpu.pipeline_mode<synchronous>, transform_indices = @transform_2, window_bounds = array<i64: 1, 128>}, {pipeline_mode = #tpu.pipeline_mode<synchronous>, transform_indices = @transform_3, window_bounds = array<i64: 128, 256>}, {pipeline_mode = #tpu.pipeline_mode<synchronous>, transform_indices = @transform_4, window_bounds = array<i64: 1, 256>}, {pipeline_mode = #tpu.pipeline_mode<synchronous>, transform_indices = @transform_5, window_bounds = array<i64: 256, 128>}, {pipeline_mode = #tpu.pipeline_mode<synchronous>, transform_indices = @transform_6, window_bounds = array<i64: 1, 128>}, {transform_indices = @transform_7, window_bounds = array<i64: 8, 128>}]} {
    %c0 = arith.constant 0 : index
    %c0_0 = arith.constant 0 : index
    %0 = vector.load %arg1[%c0, %c0_0] : memref<8x16xbf16, #tpu.memory_space<vmem>>, vector<8x16xbf16>
    %c0_1 = arith.constant 0 : index
    %c0_2 = arith.constant 0 : index
    %1 = vector.load %arg2[%c0_1, %c0_2] : memref<16x128xbf16, #tpu.memory_space<vmem>>, vector<16x128xbf16>
    %cst = arith.constant dense<0.000000e+00> : vector<8x128xf32>
    %2 = tpu.matmul %0, %1, %cst {dimension_numbers = #tpu.dot_dimension_numbers<[1], [0], [0], [1], [0, 0, 1, 1], [], []>} : vector<8x16xbf16>, vector<16x128xbf16>, vector<8x128xf32> -> vector<8x128xf32>
    %c0_3 = arith.constant 0 : index
    %c0_4 = arith.constant 0 : index
    %3 = vector.load %arg3[%c0_3, %c0_4] : memref<1x128xf32, #tpu.memory_space<vmem>>, vector<1x128xf32>
    %4 = vector.broadcast %3 : vector<1x128xf32> to vector<8x128xf32>
    %5 = arith.addf %2, %4 : vector<8x128xf32>
    %cst_5 = arith.constant 0.000000e+00 : f32
    %6 = vector.broadcast %cst_5 : f32 to vector<8x128xf32>
    %7 = arith.maximumf %5, %6 : vector<8x128xf32>
    %8 = arith.truncf %7 : vector<8x128xf32> to vector<8x128xbf16>
    %c0_6 = arith.constant 0 : index
    %c0_7 = arith.constant 0 : index
    %9 = vector.load %arg4[%c0_6, %c0_7] : memref<128x256xbf16, #tpu.memory_space<vmem>>, vector<128x256xbf16>
    %cst_8 = arith.constant dense<0.000000e+00> : vector<8x256xf32>
    %10 = tpu.matmul %8, %9, %cst_8 {dimension_numbers = #tpu.dot_dimension_numbers<[1], [0], [0], [1], [0, 0, 1, 1], [], []>} : vector<8x128xbf16>, vector<128x256xbf16>, vector<8x256xf32> -> vector<8x256xf32>
    %c0_9 = arith.constant 0 : index
    %c0_10 = arith.constant 0 : index
    %11 = vector.load %arg5[%c0_9, %c0_10] : memref<1x256xf32, #tpu.memory_space<vmem>>, vector<1x256xf32>
    %12 = vector.broadcast %11 : vector<1x256xf32> to vector<8x256xf32>
    %13 = arith.addf %10, %12 : vector<8x256xf32>
    %cst_11 = arith.constant 0.000000e+00 : f32
    %14 = vector.broadcast %cst_11 : f32 to vector<8x256xf32>
    %15 = arith.maximumf %13, %14 : vector<8x256xf32>
    %16 = arith.truncf %15 : vector<8x256xf32> to vector<8x256xbf16>
    %c0_12 = arith.constant 0 : index
    %c0_13 = arith.constant 0 : index
    %17 = vector.load %arg6[%c0_12, %c0_13] : memref<256x128xbf16, #tpu.memory_space<vmem>>, vector<256x128xbf16>
    %cst_14 = arith.constant dense<0.000000e+00> : vector<8x128xf32>
    %18 = tpu.matmul %16, %17, %cst_14 {dimension_numbers = #tpu.dot_dimension_numbers<[1], [0], [0], [1], [0, 0, 1, 1], [], []>} : vector<8x256xbf16>, vector<256x128xbf16>, vector<8x128xf32> -> vector<8x128xf32>
    %c0_15 = arith.constant 0 : index
    %c0_16 = arith.constant 0 : index
    %19 = vector.load %arg7[%c0_15, %c0_16] : memref<1x128xf32, #tpu.memory_space<vmem>>, vector<1x128xf32>
    %20 = vector.broadcast %19 : vector<1x128xf32> to vector<8x128xf32>
    %21 = arith.addf %18, %20 : vector<8x128xf32>
    %22 = arith.truncf %21 : vector<8x128xf32> to vector<8x128xbf16>
    %c0_17 = arith.constant 0 : index
    %c0_18 = arith.constant 0 : index
    %23 = vector.load %arg8[%c0_17, %c0_18] : memref<8x128xbf16, #tpu.memory_space<vmem>>, vector<8x128xbf16>
    tpu.vector_store %arg8[%c0_17, %c0_18], %22 {strides = array<i32>} : memref<8x128xbf16, #tpu.memory_space<vmem>>, vector<8x128xbf16>,
    return
  }
  func.func @transform_0(%arg0: i32) -> (i32, i32) {
    %c0_i32 = arith.constant 0 : i32
    %c0_i32_0 = arith.constant 0 : i32
    return %arg0, %c0_i32 : i32, i32
  }
  func.func @transform_1(%arg0: i32) -> (i32, i32) {
    %c0_i32 = arith.constant 0 : i32
    %c0_i32_0 = arith.constant 0 : i32
    %c0_i32_1 = arith.constant 0 : i32
    return %c0_i32, %c0_i32_0 : i32, i32
  }
  func.func @transform_2(%arg0: i32) -> (i32, i32) {
    %c0_i32 = arith.constant 0 : i32
    %c0_i32_0 = arith.constant 0 : i32
    %c0_i32_1 = arith.constant 0 : i32
    return %c0_i32, %c0_i32_0 : i32, i32
  }
  func.func @transform_3(%arg0: i32) -> (i32, i32) {
    %c0_i32 = arith.constant 0 : i32
    %c0_i32_0 = arith.constant 0 : i32
    %c0_i32_1 = arith.constant 0 : i32
    return %c0_i32, %c0_i32_0 : i32, i32
  }
  func.func @transform_4(%arg0: i32) -> (i32, i32) {
    %c0_i32 = arith.constant 0 : i32
    %c0_i32_0 = arith.constant 0 : i32
    %c0_i32_1 = arith.constant 0 : i32
    return %c0_i32, %c0_i32_0 : i32, i32
  }
  func.func @transform_5(%arg0: i32) -> (i32, i32) {
    %c0_i32 = arith.constant 0 : i32
    %c0_i32_0 = arith.constant 0 : i32
    %c0_i32_1 = arith.constant 0 : i32
    return %c0_i32, %c0_i32_0 : i32, i32
  }
  func.func @transform_6(%arg0: i32) -> (i32, i32) {
    %c0_i32 = arith.constant 0 : i32
    %c0_i32_0 = arith.constant 0 : i32
    %c0_i32_1 = arith.constant 0 : i32
    return %c0_i32, %c0_i32_0 : i32, i32
  }
  func.func @transform_7(%arg0: i32) -> (i32, i32) {
    %c0_i32 = arith.constant 0 : i32
    %c0_i32_0 = arith.constant 0 : i32
    return %arg0, %c0_i32 : i32, i32
  }
}

</mosaic_0001>

<llo_original>
// kernel: aac_policy_forward.1
$region0: #{aac_policy_forward.1}
  #allocation0 [shape = 'u32[]', space=smem, size = 0x4, offset = 0x4, fixed_abs, tag = 'smem constant byte address 0x4 - core index']
  #allocation1 [shape = 'u32[144,128]{1,0:T(1,128)}', space=vmem, size = 0x12000, scoped, tag = 'internal scratch']
  %s0 = inlined_call_operand.vmem [shape: bf16[8,16], index: 0, kind: input, shape index: {}]
  %s1 = inlined_call_operand.vmem [shape: bf16[16,128], index: 1, kind: input, shape index: {}]
  %s2 = inlined_call_operand.vmem [shape: f32[1,128], index: 2, kind: input, shape index: {}]
  %s3 = inlined_call_operand.hbm [shape: bf16[128,256], index: 3, kind: input, shape index: {}]
  %s4 = inlined_call_operand.vmem [shape: f32[1,256], index: 4, kind: input, shape index: {}]
  %s5 = inlined_call_operand.hbm [shape: bf16[256,128], index: 5, kind: input, shape index: {}]
  %s6 = inlined_call_operand.vmem [shape: f32[1,128], index: 6, kind: input, shape index: {}]
  %s7 = inlined_call_operand.vmem [shape: bf16[8,128], index: 7, kind: output, shape index: {}]
  %s8 = sld [smem:[#allocation0]]
  $region46: #{aac_policy_forward.1} parent=0
    _
  %s10 = ssub.s32 1, %s8
  %s11 = scalar_select 0, %s10, %s8
  $region1: #{aac_policy_forward.1} parent=0
    #allocation2 [shape = 'u8[65536]{0}', space=vmem, size = 0x10000, scoped, tag = 'input window, operand 3, single buffered']
    #allocation3 [shape = 's32[1]{0}', space=sflag, size = 0x4, scoped, tag = 'scoped memory for aac_policy_forward.1']
    #allocation4 [shape = 'u8[65536]{0}', space=vmem, size = 0x10000, scoped, tag = 'input window, operand 5, single buffered']
    #allocation5 [shape = 's32[1]{0}', space=sflag, size = 0x4, scoped, tag = 'scoped memory for aac_policy_forward.1']
    %12 = vsyncpa [#allocation3], 0
    %13 = vsyncpa [#allocation5], 0
    // Predicated region
    $region2: #{aac_policy_forward.1} parent=1 // pred_check
      _
    $region3: #{aac_policy_forward.1} parent=1 // pred_check_branch
      %15 = sbr.rel (0) target = $region5
    $region4: #{aac_policy_forward.1} parent=1 // pred_region
      _
    $region5: #{aac_policy_forward.1} parent=1 // pred_fallthru
      _
    // Predicated region
    $region6: #{aac_policy_forward.1} parent=1 // pred_check
      _
    $region7: #{aac_policy_forward.1} parent=1 // pred_check_branch
      %17 = sbr.rel (0) target = $region9
    $region8: #{aac_policy_forward.1} parent=1 // pred_region
      _
    $region9: #{aac_policy_forward.1} parent=1 // pred_fallthru
      _
    // Predicated region
    $region10: #{aac_policy_forward.1} parent=1 // pred_check
      _
    $region11: #{aac_policy_forward.1} parent=1 // pred_check_branch
      %19 = sbr.rel (0) target = $region13
    $region12: #{aac_policy_forward.1} parent=1 // pred_region
      _
    $region13: #{aac_policy_forward.1} parent=1 // pred_fallthru
      _
    // Predicated region
    $region14: #{aac_policy_forward.1} parent=1 // pred_check
      _
    $region15: #{aac_policy_forward.1} parent=1 // pred_check_branch
      %21 = sbr.rel (0) target = $region17
    $region16: #{aac_policy_forward.1} parent=1 // pred_region
      %s23 = ssub.s32 2048, 2048
      %24 = vsyncadd [#allocation3], %s23
      %s25 = sshll.u32 [#allocation2], 4
      %s26 = int_to_ptr.vmem [resolvable:$true] %s25
      %31 = dma.hbm_to_vmem [thread:$0]  %s3, 2048, %s26, [#allocation3], 128, 128, 8
    $region17: #{aac_policy_forward.1} parent=1 // pred_fallthru
      _
    // Predicated region
    $region18: #{aac_policy_forward.1} parent=1 // pred_check
      _
    $region19: #{aac_policy_forward.1} parent=1 // pred_check_branch
      %33 = sbr.rel (0) target = $region21
    $region20: #{aac_policy_forward.1} parent=1 // pred_region
      _
    $region21: #{aac_policy_forward.1} parent=1 // pred_fallthru
      _
    // Predicated region
    $region22: #{aac_policy_forward.1} parent=1 // pred_check
      _
    $region23: #{aac_policy_forward.1} parent=1 // pred_check_branch
      %35 = sbr.rel (0) target = $region25
    $region24: #{aac_policy_forward.1} parent=1 // pred_region
      %s37 = ssub.s32 2048, 2048
      %38 = vsyncadd [#allocation5], %s37
      %s39 = sshll.u32 [#allocation4], 4
      %s40 = int_to_ptr.vmem [resolvable:$true] %s39
      %45 = dma.hbm_to_vmem [thread:$0]  %s5, 2048, %s40, [#allocation5], 64, 64, 4
    $region25: #{aac_policy_forward.1} parent=1 // pred_fallthru
      _
    // Predicated region
    $region26: #{aac_policy_forward.1} parent=1 // pred_check
      _
    $region27: #{aac_policy_forward.1} parent=1 // pred_check_branch
      %47 = sbr.rel (0) target = $region29
    $region28: #{aac_policy_forward.1} parent=1 // pred_region
      _
    $region29: #{aac_policy_forward.1} parent=1 // pred_fallthru
      _
    // Predicated region
    $region30: #{aac_policy_forward.1} parent=1 // pred_check
      _
    $region31: #{aac_policy_forward.1} parent=1 // pred_check_branch
      %49 = sbr.rel (0) target = $region33
    $region32: #{aac_policy_forward.1} parent=1 // pred_region
      %50 = dma.done [#allocation3], 2048
    $region33: #{aac_policy_forward.1} parent=1 // pred_fallthru
      _
    // Predicated region
    $region34: #{aac_policy_forward.1} parent=1 // pred_check
      _
    $region35: #{aac_policy_forward.1} parent=1 // pred_check_branch
      %52 = sbr.rel (0) target = $region37
    $region36: #{aac_policy_forward.1} parent=1 // pred_region
      %53 = dma.done [#allocation5], 2048
    $region37: #{aac_policy_forward.1} parent=1 // pred_fallthru
      _
    %v55 = vld [vmem:[%s0] sm:$0xf]
    %v56 = vld [vmem:[%s1] sm:$0xf]
    %v57 = vld [vmem:[%s1 + $0x4] sm:$0xf]
    %v58 = vld [vmem:[%s2] sm:$0x1]
    %v60 = vlaneseq
    %v61 = vshrl.u32 %v60, 7
    %v62 = vsub.s32 0, %v61
    %v63 = vrot.slane %v58, %v62
    %v67 = vunpack.c.l.b16 %v56
    %v68 = vunpack.c.l.b16 %v57
    %v69 = vpack.c.b16 %v68, %v67
    %vm71 = vcmask 130048
    %v73 = vsel %vm71, %v55, 0
    %75 = vmatprep.subr.bf16.mxu0 0
    %76 = vmatpush1.bf16.msra.mxu0 0
    %77 = vmatprep.subr.bf16.mxu0 0
    %78 = vmatpush1.bf16.msra.mxu0 0
    %79 = vmatprep.subr.bf16.mxu0 0
    %80 = vmatpush1.bf16.msra.mxu0 0
    %81 = vmatprep.subr.bf16.mxu0 0
    %82 = vmatpush1.bf16.msra.mxu0 0
    %83 = vmatprep.subr.bf16.mxu0 0
    %84 = vmatpush1.bf16.msra.mxu0 0
    %85 = vmatprep.subr.bf16.mxu0 0
    %86 = vmatpush1.bf16.msra.mxu0 0
    %87 = vmatprep.subr.bf16.mxu0 0
    %88 = vmatpush1.bf16.msra.mxu0 0
    %89 = vmatprep.subr.bf16.mxu0 0
    %90 = vmatpush1.bf16.msra.mxu0 %v69
    %91 = vmatprep.subr.bf16.mxu0 0
    %92 = vmatpush2.bf16.msra.mxu0 0
    %93 = vmatprep.subr.bf16.mxu0 0
    %94 = vmatpush2.bf16.msra.mxu0 0
    %95 = vmatprep.subr.bf16.mxu0 0
    %96 = vmatpush2.bf16.msra.mxu0 0
    %97 = vmatprep.subr.bf16.mxu0 0
    %98 = vmatpush2.bf16.msra.mxu0 0
    %99 = vmatprep.subr.bf16.mxu0 0
    %100 = vmatpush2.bf16.msra.mxu0 0
    %101 = vmatprep.subr.bf16.mxu0 0
    %102 = vmatpush2.bf16.msra.mxu0 0
    %103 = vmatprep.subr.bf16.mxu0 0
    %104 = vmatpush2.bf16.msra.mxu0 0
    %105 = vmatprep.subr.bf16.mxu0 0
    %106 = vmatpush2.bf16.msra.mxu0 0
    %107 = vmatprep.mubr.bf16.mxu0 0
    %108 = vmatmul.mubr.bf16.gmra.mxu0 %v73
    %v109 = vpop.f32.mrf.mxu0
    %v110 = vadd.f32 %v63, %v109
    %v111 = vpop.f32.mrf.mxu0
    %v112 = vpop.f32.mrf.mxu0
    %v113 = vpop.f32.mrf.mxu0
    %114 = vdwg.mxu0
    %v115 = vmax.f32 %v110, 0.0
    %v116 = vpack.c.bf16 %v115, %v115
    %v117 = vld [vmem:[#allocation2] sm:$0xff]
    %v118 = vld [vmem:[#allocation2 + $0x8] sm:$0xff]
    %v119 = vld [vmem:[#allocation2 + $0x10] sm:$0xff]
    %v120 = vld [vmem:[#allocation2 + $0x18] sm:$0xff]
    %v121 = vld [vmem:[#allocation2 + $0x20] sm:$0xff]
    %v122 = vld [vmem:[#allocation2 + $0x28] sm:$0xff]
    %v123 = vld [vmem:[#allocation2 + $0x30] sm:$0xff]
    %v124 = vld [vmem:[#allocation2 + $0x38] sm:$0xff]
    %v125 = vld [vmem:[#allocation2 + $0x40] sm:$0xff]
    %v126 = vld [vmem:[#allocation2 + $0x48] sm:$0xff]
    %v127 = vld [vmem:[#allocation2 + $0x50] sm:$0xff]
    %v128 = vld [vmem:[#allocation2 + $0x58] sm:$0xff]
    %v129 = vld [vmem:[#allocation2 + $0x60] sm:$0xff]
    %v130 = vld [vmem:[#allocation2 + $0x68] sm:$0xff]
    %v131 = vld [vmem:[#allocation2 + $0x70] sm:$0xff]
    %v132 = vld [vmem:[#allocation2 + $0x78] sm:$0xff]
    %v133 = vld [vmem:[%s4] sm:$0x3]
    %v135 = vlaneseq
    %v136 = vshrl.u32 %v135, 7
    %v137 = vsub.s32 0, %v136
    %v138 = vrot.slane %v133, %v137
    %v139 = vlaneseq
    %v140 = vshrl.u32 %v139, 7
    %v141 = vsub.s32 1, %v140
    %v142 = vrot.slane %v133, %v141
    %v161 = vunpack.c.l.b16 %v117
    %v162 = vunpack.c.h.b16 %v117
    %v163 = vunpack.c.l.b16 %v118
    %v164 = vunpack.c.h.b16 %v118
    %v165 = vunpack.c.l.b16 %v119
    %v166 = vunpack.c.h.b16 %v119
    %v167 = vunpack.c.l.b16 %v120
    %v168 = vunpack.c.h.b16 %v120
    %v169 = vunpack.c.l.b16 %v121
    %v170 = vunpack.c.h.b16 %v121
    %v171 = vunpack.c.l.b16 %v122
    %v172 = vunpack.c.h.b16 %v122
    %v173 = vunpack.c.l.b16 %v123
    %v174 = vunpack.c.h.b16 %v123
    %v175 = vunpack.c.l.b16 %v124
    %v176 = vunpack.c.h.b16 %v124
    %v177 = vunpack.c.l.b16 %v125
    %v178 = vunpack.c.h.b16 %v125
    %v179 = vunpack.c.l.b16 %v126
    %v180 = vunpack.c.h.b16 %v126
    %v181 = vunpack.c.l.b16 %v127
    %v182 = vunpack.c.h.b16 %v127
    %v183 = vunpack.c.l.b16 %v128
    %v184 = vunpack.c.h.b16 %v128
    %v185 = vunpack.c.l.b16 %v129
    %v186 = vunpack.c.h.b16 %v129
    %v187 = vunpack.c.l.b16 %v130
    %v188 = vunpack.c.h.b16 %v130
    %v189 = vunpack.c.l.b16 %v131
    %v190 = vunpack.c.h.b16 %v131
    %v191 = vunpack.c.l.b16 %v132
    %v192 = vunpack.c.h.b16 %v132
    %v193 = vpack.c.b16 %v163, %v161
    %v194 = vpack.c.b16 %v164, %v162
    %v195 = vpack.c.b16 %v167, %v165
    %v196 = vpack.c.b16 %v168, %v166
    %v197 = vpack.c.b16 %v171, %v169
    %v198 = vpack.c.b16 %v172, %v170
    %v199 = vpack.c.b16 %v175, %v173
    %v200 = vpack.c.b16 %v176, %v174
    %v201 = vpack.c.b16 %v179, %v177
    %v202 = vpack.c.b16 %v180, %v178
    %v203 = vpack.c.b16 %v183, %v181
    %v204 = vpack.c.b16 %v184, %v182
    %v205 = vpack.c.b16 %v187, %v185
    %v206 = vpack.c.b16 %v188, %v186
    %v207 = vpack.c.b16 %v191, %v189
    %v208 = vpack.c.b16 %v192, %v190
    %225 = vmatprep.subr.bf16.mxu0 %v208
    %226 = vmatpush1.bf16.msra.mxu0 %v207
    %227 = vmatprep.subr.bf16.mxu0 %v206
    %228 = vmatpush1.bf16.msra.mxu0 %v205
    %229 = vmatprep.subr.bf16.mxu0 %v204
    %230 = vmatpush1.bf16.msra.mxu0 %v203
    %231 = vmatprep.subr.bf16.mxu0 %v202
    %232 = vmatpush1.bf16.msra.mxu0 %v201
    %233 = vmatprep.subr.bf16.mxu0 %v200
    %234 = vmatpush1.bf16.msra.mxu0 %v199
    %235 = vmatprep.subr.bf16.mxu0 %v198
    %236 = vmatpush1.bf16.msra.mxu0 %v197
    %237 = vmatprep.subr.bf16.mxu0 %v196
    %238 = vmatpush1.bf16.msra.mxu0 %v195
    %239 = vmatprep.subr.bf16.mxu0 %v194
    %240 = vmatpush1.bf16.msra.mxu0 %v193
    %241 = vmatprep.subr.bf16.mxu0 0
    %242 = vmatpush2.bf16.msra.mxu0 0
    %243 = vmatprep.subr.bf16.mxu0 0
    %244 = vmatpush2.bf16.msra.mxu0 0
    %245 = vmatprep.subr.bf16.mxu0 0
    %246 = vmatpush2.bf16.msra.mxu0 0
    %247 = vmatprep.subr.bf16.mxu0 0
    %248 = vmatpush2.bf16.msra.mxu0 0
    %249 = vmatprep.subr.bf16.mxu0 0
    %250 = vmatpush2.bf16.msra.mxu0 0
    %251 = vmatprep.subr.bf16.mxu0 0
    %252 = vmatpush2.bf16.msra.mxu0 0
    %253 = vmatprep.subr.bf16.mxu0 0
    %254 = vmatpush2.bf16.msra.mxu0 0
    %255 = vmatprep.subr.bf16.mxu0 0
    %256 = vmatpush2.bf16.msra.mxu0 0
    %257 = vmatprep.mubr.bf16.mxu0 0
    %258 = vmatmul.mubr.bf16.gmra.mxu0 %v116
    %v259 = vpop.f32.mrf.mxu0
    %v260 = vadd.f32 %v138, %v259
    %v261 = vpop.f32.mrf.mxu0
    %v262 = vadd.f32 %v142, %v261
    %v263 = vpop.f32.mrf.mxu0
    %v264 = vpop.f32.mrf.mxu0
    %265 = vdwg.mxu0
    %v266 = vmax.f32 %v260, 0.0
    %v267 = vmax.f32 %v262, 0.0
    %v268 = vpack.c.bf16 %v266, %v266
    %v269 = vpack.c.bf16 %v267, %v267
    %v270 = vld [vmem:[#allocation4] sm:$0xf]
    %v271 = vld [vmem:[#allocation4 + $0x4] sm:$0xf]
    %v272 = vld [vmem:[#allocation4 + $0x8] sm:$0xf]
    %v273 = vld [vmem:[#allocation4 + $0xc] sm:$0xf]
    %v274 = vld [vmem:[#allocation4 + $0x10] sm:$0xf]
    %v275 = vld [vmem:[#allocation4 + $0x14] sm:$0xf]
    %v276 = vld [vmem:[#allocation4 + $0x18] sm:$0xf]
    %v277 = vld [vmem:[#allocation4 + $0x1c] sm:$0xf]
    %v278 = vld [vmem:[#allocation4 + $0x20] sm:$0xf]
    %v279 = vld [vmem:[#allocation4 + $0x24] sm:$0xf]
    %v280 = vld [vmem:[#allocation4 + $0x28] sm:$0xf]
    %v281 = vld [vmem:[#allocation4 + $0x2c] sm:$0xf]
    %v282 = vld [vmem:[#allocation4 + $0x30] sm:$0xf]
    %v283 = vld [vmem:[#allocation4 + $0x34] sm:$0xf]
    %v284 = vld [vmem:[#allocation4 + $0x38] sm:$0xf]
    %v285 = vld [vmem:[#allocation4 + $0x3c] sm:$0xf]
    %v286 = vld [vmem:[#allocation4 + $0x40] sm:$0xf]
    %v287 = vld [vmem:[#allocation4 + $0x44] sm:$0xf]
    %v288 = vld [vmem:[#allocation4 + $0x48] sm:$0xf]
    %v289 = vld [vmem:[#allocation4 + $0x4c] sm:$0xf]
    %v290 = vld [vmem:[#allocation4 + $0x50] sm:$0xf]
    %v291 = vld [vmem:[#allocation4 + $0x54] sm:$0xf]
    %v292 = vld [vmem:[#allocation4 + $0x58] sm:$0xf]
    %v293 = vld [vmem:[#allocation4 + $0x5c] sm:$0xf]
    %v294 = vld [vmem:[#allocation4 + $0x60] sm:$0xf]
    %v295 = vld [vmem:[#allocation4 + $0x64] sm:$0xf]
    %v296 = vld [vmem:[#allocation4 + $0x68] sm:$0xf]
    %v297 = vld [vmem:[#allocation4 + $0x6c] sm:$0xf]
    %v298 = vld [vmem:[#allocation4 + $0x70] sm:$0xf]
    %v299 = vld [vmem:[#allocation4 + $0x74] sm:$0xf]
    %v300 = vld [vmem:[#allocation4 + $0x78] sm:$0xf]
    %v301 = vld [vmem:[#allocation4 + $0x7c] sm:$0xf]
    %v302 = vld [vmem:[%s6] sm:$0x1]
    %v304 = vlaneseq
    %v305 = vshrl.u32 %v304, 7
    %v306 = vsub.s32 0, %v305
    %v307 = vrot.slane %v302, %v306
    %v341 = vunpack.c.l.b16 %v270
    %v342 = vunpack.c.l.b16 %v271
    %v343 = vunpack.c.l.b16 %v272
    %v344 = vunpack.c.l.b16 %v273
    %v345 = vunpack.c.l.b16 %v274
    %v346 = vunpack.c.l.b16 %v275
    %v347 = vunpack.c.l.b16 %v276
    %v348 = vunpack.c.l.b16 %v277
    %v349 = vunpack.c.l.b16 %v278
    %v350 = vunpack.c.l.b16 %v279
    %v351 = vunpack.c.l.b16 %v280
    %v352 = vunpack.c.l.b16 %v281
    %v353 = vunpack.c.l.b16 %v282
    %v354 = vunpack.c.l.b16 %v283
    %v355 = vunpack.c.l.b16 %v284
    %v356 = vunpack.c.l.b16 %v285
    %v357 = vunpack.c.l.b16 %v286
    %v358 = vunpack.c.l.b16 %v287
    %v359 = vunpack.c.l.b16 %v288
    %v360 = vunpack.c.l.b16 %v289
    %v361 = vunpack.c.l.b16 %v290
    %v362 = vunpack.c.l.b16 %v291
    %v363 = vunpack.c.l.b16 %v292
    %v364 = vunpack.c.l.b16 %v293
    %v365 = vunpack.c.l.b16 %v294
    %v366 = vunpack.c.l.b16 %v295
    %v367 = vunpack.c.l.b16 %v296
    %v368 = vunpack.c.l.b16 %v297
    %v369 = vunpack.c.l.b16 %v298
    %v370 = vunpack.c.l.b16 %v299
    %v371 = vunpack.c.l.b16 %v300
    %v372 = vunpack.c.l.b16 %v301
    %v373 = vpack.c.b16 %v342, %v341
    %v374 = vpack.c.b16 %v344, %v343
    %v375 = vpack.c.b16 %v346, %v345
    %v376 = vpack.c.b16 %v348, %v347
    %v377 = vpack.c.b16 %v350, %v349
    %v378 = vpack.c.b16 %v352, %v351
    %v379 = vpack.c.b16 %v354, %v353
    %v380 = vpack.c.b16 %v356, %v355
    %v381 = vpack.c.b16 %v358, %v357
    %v382 = vpack.c.b16 %v360, %v359
    %v383 = vpack.c.b16 %v362, %v361
    %v384 = vpack.c.b16 %v364, %v363
    %v385 = vpack.c.b16 %v366, %v365
    %v386 = vpack.c.b16 %v368, %v367
    %v387 = vpack.c.b16 %v370, %v369
    %v388 = vpack.c.b16 %v372, %v371
    %405 = vmatprep.subr.bf16.mxu0 0
    %406 = vmatpush1.bf16.msra.mxu0 %v380
    %407 = vmatprep.subr.bf16.mxu0 0
    %408 = vmatpush1.bf16.msra.mxu0 %v379
    %409 = vmatprep.subr.bf16.mxu0 0
    %410 = vmatpush1.bf16.msra.mxu0 %v378
    %411 = vmatprep.subr.bf16.mxu0 0
    %412 = vmatpush1.bf16.msra.mxu0 %v377
    %413 = vmatprep.subr.bf16.mxu0 0
    %414 = vmatpush1.bf16.msra.mxu0 %v376
    %415 = vmatprep.subr.bf16.mxu0 0
    %416 = vmatpush1.bf16.msra.mxu0 %v375
    %417 = vmatprep.subr.bf16.mxu0 0
    %418 = vmatpush1.bf16.msra.mxu0 %v374
    %419 = vmatprep.subr.bf16.mxu0 0
    %420 = vmatpush1.bf16.msra.mxu0 %v373
    %421 = vmatprep.subr.bf16.mxu0 0
    %422 = vmatpush2.bf16.msra.mxu0 %v388
    %423 = vmatprep.subr.bf16.mxu0 0
    %424 = vmatpush2.bf16.msra.mxu0 %v387
    %425 = vmatprep.subr.bf16.mxu0 0
    %426 = vmatpush2.bf16.msra.mxu0 %v386
    %427 = vmatprep.subr.bf16.mxu0 0
    %428 = vmatpush2.bf16.msra.mxu0 %v385
    %429 = vmatprep.subr.bf16.mxu0 0
    %430 = vmatpush2.bf16.msra.mxu0 %v384
    %431 = vmatprep.subr.bf16.mxu0 0
    %432 = vmatpush2.bf16.msra.mxu0 %v383
    %433 = vmatprep.subr.bf16.mxu0 0
    %434 = vmatpush2.bf16.msra.mxu0 %v382
    %435 = vmatprep.subr.bf16.mxu0 0
    %436 = vmatpush2.bf16.msra.mxu0 %v381
    %437 = vmatprep.mubr.bf16.mxu0 %v269
    %438 = vmatmul.mubr.bf16.gmra.mxu0 %v268
    %v439 = vpop.f32.mrf.mxu0
    %v440 = vadd.f32 %v307, %v439
    %v441 = vpop.f32.mrf.mxu0
    %v442 = vpop.f32.mrf.mxu0
    %v443 = vpop.f32.mrf.mxu0
    %444 = vdwg.mxu0
    %v445 = vpack.c.bf16 %v440, %v440
    %446 = vst [vmem:[%s7] sm:$0xf] %v445
    // Predicated region
    $region38: #{aac_policy_forward.1} parent=1 // pred_check
      _
    $region39: #{aac_policy_forward.1} parent=1 // pred_check_branch
      %448 = sbr.rel (0) target = $region41
    $region40: #{aac_policy_forward.1} parent=1 // pred_region
      _
    $region41: #{aac_policy_forward.1} parent=1 // pred_fallthru
      _
    // Predicated region
    $region42: #{aac_policy_forward.1} parent=1 // pred_check
      _
    $region43: #{aac_policy_forward.1} parent=1 // pred_check_branch
      %450 = sbr.rel (0) target = $region45
    $region44: #{aac_policy_forward.1} parent=1 // pred_region
      _
    $region45: #{aac_policy_forward.1} parent=1 // pred_fallthru
      _
    %451 = vsyncpa [#allocation3], 1
    %452 = vsyncpa [#allocation5], 1

</llo_original>
